<compile_context>
chip_gen: v7x
topology: tpu7x:2x2x1
jax: 0.10.0
libtpu: 0.0.40
codegen_flags: <defaults>
</compile_context>

<pallas_src>
import functools
import math

import jax
import jax.numpy as jnp
from jax import lax
from jax.experimental import pallas as pl
from jax.experimental.pallas import tpu as pltpu

_BIG = 1e30
_MXU_DTYPE = jnp.bfloat16              # bf16 MXU inputs, f32 accumulation


def _round_up(x, m):
    return ((x + m - 1) // m) * m


def _mxu_dot(a, b):
    """Matmul on the MXU with bf16 inputs and f32 accumulation."""
    return jnp.dot(a.astype(_MXU_DTYPE), b.astype(_MXU_DTYPE),
                   preferred_element_type=jnp.float32)


# ----------------------------------------------------------------------------
# Generation-aware sizing (v7x: 64 MiB/TC VMEM, 256-wide MXU; v6e: 128 MiB,
# 256-wide; v5e: 128 MiB, 128-wide).
# ----------------------------------------------------------------------------
@functools.lru_cache(maxsize=None)
def _device_kind():
    try:
        return jax.devices()[0].device_kind.lower()
    except Exception:
        return ""


@functools.lru_cache(maxsize=None)
def _vmem_capacity_bytes():
    try:
        return int(pltpu.get_tpu_info().vmem_capacity_bytes)
    except Exception:
        pass
    return (64 << 20) if "v7" in _device_kind() else (128 << 20)


@functools.lru_cache(maxsize=None)
def _mxu_width():
    kind = _device_kind()
    return 256 if ("v6" in kind or "v7" in kind) else 128


@functools.lru_cache(maxsize=None)
def _vmem_limit_bytes():
    # Leave headroom below the physical per-core capacity.
    return min(int(_vmem_capacity_bytes() * 0.7), 96 << 20)


# ----------------------------------------------------------------------------
# Tiled linear kernel: y = x @ W + b   (used for per-block projections, mid, head)
# ----------------------------------------------------------------------------
def _linear_kernel(x_ref, w_ref, b_ref, o_ref, acc_ref):
    @pl.when(pl.program_id(2) == 0)
    def _init():
        acc_ref[...] = jnp.zeros_like(acc_ref)

    acc_ref[...] += _mxu_dot(x_ref[...], w_ref[...])

    @pl.when(pl.program_id(2) == pl.num_programs(2) - 1)
    def _finalize():
        o_ref[...] = (acc_ref[...] + b_ref[...]).astype(o_ref.dtype)


def linear(x, w, b):
    m, kdim = x.shape
    kw, n = w.shape
    assert kdim == kw
    wide = _mxu_width() >= 256
    tm = 256 if (wide and m >= 256) else 128
    tn = 256 if (wide and n >= 256) else 128
    tk = 512 if (wide and kdim >= 512) else 256
    tm = min(tm, _round_up(m, 8))
    tn = min(tn, _round_up(n, 128))
    tk = min(tk, _round_up(kdim, 128))
    mp, kp, np_ = _round_up(m, tm), _round_up(kdim, tk), _round_up(n, tn)
    xp = x if (mp == m and kp == kdim) else jnp.pad(x, ((0, mp - m), (0, kp - kdim)))
    wp = w if (kp == kdim and np_ == n) else jnp.pad(w, ((0, kp - kdim), (0, np_ - n)))
    bp = b if np_ == n else jnp.pad(b, ((0, 0), (0, np_ - n)))

    out = pl.pallas_call(
        _linear_kernel,
        out_shape=jax.ShapeDtypeStruct((mp, np_), jnp.float32),
        grid=(mp // tm, np_ // tn, kp // tk),
        in_specs=[
            pl.BlockSpec((tm, tk), lambda i, j, kk: (i, kk)),
            pl.BlockSpec((tk, tn), lambda i, j, kk: (kk, j)),
            pl.BlockSpec((1, tn), lambda i, j, kk: (0, j)),
        ],
        out_specs=pl.BlockSpec((tm, tn), lambda i, j, kk: (i, j)),
        scratch_shapes=[pltpu.VMEM((tm, tn), jnp.float32)],
        compiler_params=pltpu.CompilerParams(
            dimension_semantics=("parallel", "parallel", "arbitrary"),
            vmem_limit_bytes=_vmem_limit_bytes(),
        ),
    )(xp, wp, bp)
    if mp != m or np_ != n:
        out = out[:m, :n]
    return out


# ----------------------------------------------------------------------------
# Fused GravNetBlock kernel: kNN in precomputed s-space + deferred neighbor
# gather + weighted mean/max aggregation + lin_out1/lin_out2 + ReLU,
# tiled over query rows.  h / s are computed ONCE per block (hoisted) and
# passed in as resident inputs.
# ----------------------------------------------------------------------------
def _gravnet_block_kernel(xq_ref, sq_ref, bq_ref, sT_ref, h_ref, br_ref,
                          w1_ref, w2_ref, b2_ref, o_ref,
                          picks_ref, wts_ref, *, k, s_dim):
    f32 = jnp.float32
    xq = xq_ref[...]                        # (TQ, Cin) query tile
    sq = sq_ref[...]                        # (TQ, S)   query s-coords
    sT = sT_ref[...]                        # (S, N)    all-node s-coords (resident)
    h = h_ref[...]                          # (N, F)    bf16 gather table (resident)
    tq = xq.shape[0]
    n = h.shape[0]
    fdim = h.shape[1]

    # lin_out1 on the streamed query tile (GravNetConv.lin_out1 has no bias).
    out1 = _mxu_dot(xq, w1_ref[...])        # (TQ, Cout)

    # Pairwise squared distances in the learned s-space (direct VPU diff^2 over
    # the tiny s dimension).
    d2 = jnp.zeros((tq, n), f32)
    for d in range(s_dim):                  # s_dim ~ 4: static unroll
        diff = sq[:, d:d + 1] - sT[d:d + 1, :]
        d2 = d2 + diff * diff
    same_graph = bq_ref[...] == br_ref[...]               # (TQ, N)
    d2 = jnp.where(same_graph, d2, _BIG)

    col_idx = lax.broadcasted_iota(f32, (tq, n), 1)        # hoisted out of the loop
    n_f = float(n)

    # ---- serial k-NN selection.  Only the masked argmin lives in the loop; the
    # neighbor-gather matmul is deferred: one-hot picks go to a (k*TQ, N) bf16
    # scratch slab, edge weights stay in f32 (with -1 marking invalid picks).
    def body(i, dcur):
        mval = jnp.min(dcur, axis=1, keepdims=True)         # (TQ, 1)
        idx_masked = jnp.where(dcur <= mval, col_idx, n_f)  # (TQ, N)
        min_idx = jnp.min(idx_masked, axis=1, keepdims=True)  # tie-break: lowest idx
        pick = idx_masked == min_idx                         # exactly-one-hot rows
        picks_ref[pl.ds(i * tq, tq), :] = pick.astype(_MXU_DTYPE)
        valid = mval < (_BIG * 0.5)
        wts_ref[i] = jnp.where(valid, jnp.exp(-10.0 * mval), -1.0)
        return jnp.where(pick, _BIG, dcur)

    # Unroll only for small k (realistic k ~ 20-40 would blow live ranges).
    _ = lax.fori_loop(0, k, body, d2, unroll=(k <= 8))

    # ---- ONE batched neighbor-gather matmul for all k picks (off the serial
    # argmin critical path; far better MXU utilization than k narrow matmuls).
    gathered = jnp.dot(picks_ref[...], h, preferred_element_type=f32)  # (k*TQ, F)

    msg_sum = jnp.zeros((tq, fdim), f32)
    msg_max = jnp.full((tq, fdim), -_BIG, f32)
    cnt = jnp.zeros((tq, 1), f32)
    for i in range(k):                       # static; small (TQ, F) slabs only
        wt = wts_ref[i]                      # (TQ, 1) f32
        valid = wt >= 0.0
        msg = jnp.maximum(wt, 0.0) * gathered[i * tq:(i + 1) * tq, :]
        msg_sum = msg_sum + msg
        msg_max = jnp.maximum(msg_max, jnp.where(valid, msg, -_BIG))
        cnt = cnt + valid.astype(f32)

    mean_agg = msg_sum / jnp.maximum(cnt, 1.0)                  # scatter(mean)
    max_agg = jnp.where(msg_max <= -_BIG * 0.5, 0.0, msg_max)   # scatter(max)

    # lin_out1(x) + lin_out2([mean, max]) + ReLU, as ONE fused K=2F matmul.
    agg = jnp.concatenate([mean_agg, max_agg], axis=1)          # (TQ, 2F)
    y = out1 + _mxu_dot(agg, w2_ref[...]) + b2_ref[...]
    o_ref[...] = jnp.maximum(y, 0.0)


def gravnet_block(x, bc, br, blk, k, *, tq, vmem_limit):
    n, cin = x.shape
    assert n % tq == 0
    f = blk["Wh"].shape[1]
    s_dim = blk["Ws"].shape[1]
    cout = blk["W1"].shape[1]

    # ---- hoisted all-node projections: ONE fused linear produces
    # [lin_h(x) | lin_s(x)] for every node (computed once per block, not once
    # per query tile).
    w_hs = jnp.concatenate([blk["Wh"], blk["Ws"]], axis=1)
    b_hs = jnp.concatenate([blk["bh"], blk["bs"]], axis=1)
    hs = linear(x, w_hs, b_hs)                   # (N, F + S) f32
    h = hs[:, :f].astype(_MXU_DTYPE)             # (N, F) bf16 gather table
    s_nodes = hs[:, f:f + s_dim]                 # (N, S)
    s_t = s_nodes.T                              # (S, N)

    kern = functools.partial(_gravnet_block_kernel, k=k, s_dim=s_dim)
    return pl.pallas_call(
        kern,
        out_shape=jax.ShapeDtypeStruct((n, cout), jnp.float32),
        grid=(n // tq,),
        in_specs=[
            pl.BlockSpec((tq, cin), lambda i: (i, 0)),      # x query tile (for lin_out1)
            pl.BlockSpec((tq, s_dim), lambda i: (i, 0)),    # s query tile
            pl.BlockSpec((tq, 1), lambda i: (i, 0)),        # batch ids, query column
            pl.BlockSpec((s_dim, n), lambda i: (0, 0)),     # s^T (resident)
            pl.BlockSpec((n, f), lambda i: (0, 0)),         # h bf16 (resident)
            pl.BlockSpec((1, n), lambda i: (0, 0)),         # batch ids, neighbor row
            pl.BlockSpec((cin, cout), lambda i: (0, 0)),    # W1 (lin_out1, no bias)
            pl.BlockSpec((2 * f, cout), lambda i: (0, 0)),  # W2 (lin_out2)
            pl.BlockSpec((1, cout), lambda i: (0, 0)),      # b2
        ],
        out_specs=pl.BlockSpec((tq, cout), lambda i: (i, 0)),
        scratch_shapes=[
            pltpu.VMEM((k * tq, n), _MXU_DTYPE),            # deferred one-hot pick slab
            pltpu.VMEM((k, tq, 1), jnp.float32),            # f32 edge weights / validity
        ],
        compiler_params=pltpu.CompilerParams(
            dimension_semantics=("parallel",),
            vmem_limit_bytes=vmem_limit,
        ),
    )(x, s_nodes, bc, s_t, h, br, blk["W1"], blk["W2"], blk["b2"])


# ----------------------------------------------------------------------------
# MultiAggregation(['min', 'max', 'mean', 'sum']) global pooling per graph.
# sum/count/mean via one-hot MXU matmul, min/max as masked reductions,
# single lane-dense store of the whole padded output.
# ----------------------------------------------------------------------------
def _pool_kernel(x_ref, bc_ref, br_ref, o_ref, *, num_graphs):
    f32 = jnp.float32
    x = x_ref[...]                              # (N, D)
    bc = bc_ref[...]                            # (N, 1) int32
    br = br_ref[...]                            # (1, N) int32
    n, d = x.shape
    gp = o_ref.shape[0]

    gid = lax.broadcasted_iota(jnp.int32, (gp, n), 0)
    onehot = (gid == br).astype(f32)            # (gp, N); padded graphs -> zero rows
    sums = jnp.dot(onehot, x, preferred_element_type=f32)      # (gp, D) on the MXU
    cnt = jnp.sum(onehot, axis=1, keepdims=True)               # (gp, 1)
    means = sums / jnp.maximum(cnt, 1.0)

    row_id = lax.broadcasted_iota(jnp.int32, (gp, d), 0)        # hoisted
    mins = jnp.zeros((gp, d), f32)
    maxs = jnp.zeros((gp, d), f32)
    for g in range(num_graphs):                 # static; G is small
        m = bc == g
        mn = jnp.min(jnp.where(m, x, _BIG), axis=0, keepdims=True)
        mx = jnp.max(jnp.where(m, x, -_BIG), axis=0, keepdims=True)
        row = row_id == g
        mins = jnp.where(row, mn, mins)
        maxs = jnp.where(row, mx, maxs)
    has = cnt > 0.0
    mins = jnp.where(has, mins, 0.0)
    maxs = jnp.where(has, maxs, 0.0)

    o_ref[...] = jnp.concatenate([mins, maxs, means, sums], axis=1)


def multi_pool(x, bc, br, num_graphs, *, vmem_limit):
    n, d = x.shape
    gp = _round_up(num_graphs, 8)               # sublane-pad pooled output
    kern = functools.partial(_pool_kernel, num_graphs=num_graphs)
    out = pl.pallas_call(
        kern,
        out_shape=jax.ShapeDtypeStruct((gp, 4 * d), jnp.float32),
        grid=(1,),
        in_specs=[
            pl.BlockSpec((n, d), lambda i: (0, 0)),
            pl.BlockSpec((n, 1), lambda i: (0, 0)),
            pl.BlockSpec((1, n), lambda i: (0, 0)),
        ],
        out_specs=pl.BlockSpec((gp, 4 * d), lambda i: (0, 0)),
        compiler_params=pltpu.CompilerParams(
            dimension_semantics=("arbitrary",),
            vmem_limit_bytes=vmem_limit,
        ),
    )(x, bc, br)
    return out[:num_graphs]


# ----------------------------------------------------------------------------
# Generation-aware query-tile (TQ) derivation for the block kernel
# ----------------------------------------------------------------------------
def _block_vmem_bytes(n, tq, cin, f, cout, s_dim, k):
    stream = 2 * tq * (cin + s_dim + 1 + cout) * 4                 # double-buffered tiles
    resident = 2 * (n * f * 2 + s_dim * n * 4 + n * 4              # h (bf16), s^T, br
                    + cin * cout * 4 + 2 * f * cout * 4 + cout * 4)
    scratch = k * tq * n * 2 + k * tq * 128 * 4                    # pick slab + weights
    temps = 6 * tq * n * 4                                         # dcur / d2 / iota / masks
    return stream + resident + scratch + temps


def _pick_tq(n, block_dims, s_dim, k, budget):
    tq = max(8, min(128, _round_up(n, 8)))
    while tq > 8:
        np_c = _round_up(n, tq)
        worst = max(_block_vmem_bytes(np_c, tq, cin, f, cout, s_dim, k)
                    for cin, f, cout in block_dims)
        if worst <= budget:
            break
        tq //= 2
    return max(8, (tq // 8) * 8)


# ----------------------------------------------------------------------------
# Parameter construction (deterministic, PyTorch-Linear-like init)
# ----------------------------------------------------------------------------
def _init_linear(key, fan_in, fan_out, bias=True):
    k1, k2 = jax.random.split(key)
    lim = 1.0 / math.sqrt(fan_in)
    w = jax.random.uniform(k1, (fan_in, fan_out), jnp.float32, -lim, lim)
    if bias:
        b = jax.random.uniform(k2, (1, fan_out), jnp.float32, -lim, lim)
    else:
        b = jnp.zeros((1, fan_out), jnp.float32)
    return w, b


def build_block_config(nb_inputs, hidden_channels, num_blocks, step=3):
    cfg = []
    total_hidden = nb_inputs
    for n in range(num_blocks):
        multiplier = n // step
        if n == 0:
            in_f, out_f = nb_inputs, hidden_channels
        else:
            in_f = hidden_channels * 2 ** multiplier
            out_f = in_f
            if n % step == step - 1:
                out_f *= 2
        total_hidden += out_f
        cfg.append((in_f, out_f))
    return cfg, total_hidden


def init_params(key, cfg, s_dim, flr, total_hidden, hidden_channels, nb_outputs):
    blocks = []
    for in_f, out_f in cfg:
        key, k1, k2, k3, k4 = jax.random.split(key, 5)
        ws, bs = _init_linear(k1, in_f, s_dim)             # lin_s
        wh, bh = _init_linear(k2, in_f, flr)               # lin_h
        w1, _ = _init_linear(k3, in_f, out_f, bias=False)  # lin_out1 (no bias)
        w2, b2 = _init_linear(k4, 2 * flr, out_f)          # lin_out2
        blocks.append(dict(Ws=ws, bs=bs, Wh=wh, bh=bh, W1=w1, W2=w2, b2=b2))
    key, km, kh = jax.random.split(key, 3)
    wmid, bmid = _init_linear(km, total_hidden, hidden_channels * 2)
    whead, bhead = _init_linear(kh, hidden_channels * 2 * 4, nb_outputs)
    return dict(blocks=blocks, Wmid=wmid, bmid=bmid, Whead=whead, bhead=bhead)


# ----------------------------------------------------------------------------
# Full GravNet forward
# ----------------------------------------------------------------------------
def gravnet_forward(x, batch, params, k, num_graphs, *, tq=None):
    n = x.shape[0]
    vmem_limit = _vmem_limit_bytes()
    s_dim = params["blocks"][0]["Ws"].shape[1]
    block_dims = [(blk["W1"].shape[0], blk["Wh"].shape[1], blk["W1"].shape[1])
                  for blk in params["blocks"]]
    if tq is None:
        tq = _pick_tq(n, block_dims, s_dim, k, vmem_limit)
    tq = max(8, _round_up(tq, 8))

    np_ = _round_up(n, tq)
    batch = batch.astype(jnp.int32)
    if np_ != n:
        # Padded rows carry a sentinel graph id so they never mix with real
        # nodes in the kNN, the aggregation, or the pooling.
        x = jnp.pad(x, ((0, np_ - n), (0, 0)))
        batch = jnp.pad(batch, (0, np_ - n), constant_values=num_graphs)
    bc = batch.reshape(np_, 1)
    br = batch.reshape(1, np_)

    feats = [x]
    cur = x
    for blk in params["blocks"]:
        cur = gravnet_block(cur, bc, br, blk, k, tq=tq, vmem_limit=vmem_limit)
        feats.append(cur)

    xc = jnp.concatenate(feats, axis=1)                       # skip-feature concat
    xm = linear(xc, params["Wmid"], params["bmid"])           # mid
    pooled = multi_pool(xm, bc, br, num_graphs, vmem_limit=vmem_limit)
    return linear(pooled, params["Whead"], params["bhead"])   # head


# ----------------------------------------------------------------------------
if __name__ == "__main__":
    # Small configuration consistent with GravNet.__init__ channel arithmetic.
    NB_INPUTS = 8
    NB_OUTPUTS = 16
    HIDDEN = 32
    NUM_BLOCKS = 4
    S_DIM = 4
    FLR = 16
    K = 4
    N_NODES = 16
    N_GRAPHS = 2
    TQ = 8   # small query tile so the row-tiled grid path (grid=(2,)) is exercised
    # TODO(synk): graphs with fewer than K nodes (partial kNN neighborhoods, as
    # torch_cluster.knn would return) are not exercised here; each test graph
    # has >= K nodes.

    cfg, total_hidden = build_block_config(NB_INPUTS, HIDDEN, NUM_BLOCKS)

    key = jax.random.PRNGKey(0)
    key, kp, kx = jax.random.split(key, 3)
    params = init_params(kp, cfg, S_DIM, FLR, total_hidden, HIDDEN, NB_OUTPUTS)

    x = jax.random.normal(kx, (N_NODES, NB_INPUTS), jnp.float32)
    batch = jnp.repeat(
        jnp.arange(N_GRAPHS, dtype=jnp.int32), N_NODES // N_GRAPHS
    )

    out = gravnet_forward(x, batch, params, K, N_GRAPHS, tq=TQ)
    out = jax.block_until_ready(out)

    assert out.shape == (N_GRAPHS, NB_OUTPUTS), out.shape
    assert bool(jnp.all(jnp.isfinite(out)))
    print("KERNEL_OK")
</pallas_src>

<mosaic_0001>
module attributes {stable_mosaic.version = 11 : i64} {
  func.func @_linear_kernel(%arg0: i32, %arg1: i32, %arg2: i32, %arg3: memref<16x128xf32, #tpu.memory_space<vmem>>, %arg4: memref<128x128xf32, #tpu.memory_space<vmem>>, %arg5: memref<1x128xf32, #tpu.memory_space<vmem>>, %arg6: memref<16x128xf32, #tpu.memory_space<vmem>>, %arg7: memref<16x128xf32, #tpu.memory_space<vmem>>) attributes {dimension_semantics = [#tpu.dimension_semantics<parallel>, #tpu.dimension_semantics<parallel>, #tpu.dimension_semantics<arbitrary>], iteration_bounds = array<i64: 1, 1, 1>, scalar_prefetch = 0 : i64, scratch_operands = 1 : i64, tpu.core_type = #tpu.core_type<tc>, window_params = [{transform_indices = @transform_0, window_bounds = array<i64: 16, 128>}, {transform_indices = @transform_1, window_bounds = array<i64: 128, 128>}, {transform_indices = @transform_2, window_bounds = array<i64: 1, 128>}, {transform_indices = @transform_3, window_bounds = array<i64: 16, 128>}]} {
    %c0_i32 = arith.constant 0 : i32
    %0 = arith.cmpi eq, %arg2, %c0_i32 : i32
    %1 = arith.extui %0 : i1 to i32
    %c0_i32_0 = arith.constant 0 : i32
    %2 = arith.cmpi ne, %1, %c0_i32_0 : i32
    scf.if %2 {
      %cst_10 = arith.constant 0.000000e+00 : f32
      %14 = vector.broadcast %cst_10 : f32 to vector<16x128xf32>
      %c0_11 = arith.constant 0 : index
      %c0_12 = arith.constant 0 : index
      %15 = vector.load %arg7[%c0_11, %c0_12] : memref<16x128xf32, #tpu.memory_space<vmem>>, vector<16x128xf32>
      tpu.vector_store %arg7[%c0_11, %c0_12], %14 {strides = array<i32>} : memref<16x128xf32, #tpu.memory_space<vmem>>, vector<16x128xf32>,
    } else {
    }
    %c0 = arith.constant 0 : index
    %c0_1 = arith.constant 0 : index
    %3 = vector.load %arg7[%c0, %c0_1] : memref<16x128xf32, #tpu.memory_space<vmem>>, vector<16x128xf32>
    %c0_2 = arith.constant 0 : index
    %c0_3 = arith.constant 0 : index
    %4 = vector.load %arg3[%c0_2, %c0_3] : memref<16x128xf32, #tpu.memory_space<vmem>>, vector<16x128xf32>
    %c0_4 = arith.constant 0 : index
    %c0_5 = arith.constant 0 : index
    %5 = vector.load %arg4[%c0_4, %c0_5] : memref<128x128xf32, #tpu.memory_space<vmem>>, vector<128x128xf32>
    %6 = arith.truncf %4 : vector<16x128xf32> to vector<16x128xbf16>
    %7 = arith.truncf %5 : vector<128x128xf32> to vector<128x128xbf16>
    %cst = arith.constant dense<0.000000e+00> : vector<16x128xf32>
    %8 = tpu.matmul %6, %7, %cst {dimension_numbers = #tpu.dot_dimension_numbers<[1], [0], [0], [1], [0, 0, 1, 1], [], []>} : vector<16x128xbf16>, vector<128x128xbf16>, vector<16x128xf32> -> vector<16x128xf32>
    %9 = arith.addf %3, %8 : vector<16x128xf32>
    %c0_6 = arith.constant 0 : index
    %c0_7 = arith.constant 0 : index
    %10 = vector.load %arg7[%c0_6, %c0_7] : memref<16x128xf32, #tpu.memory_space<vmem>>, vector<16x128xf32>
    tpu.vector_store %arg7[%c0_6, %c0_7], %9 {strides = array<i32>} : memref<16x128xf32, #tpu.memory_space<vmem>>, vector<16x128xf32>,
    %c0_i32_8 = arith.constant 0 : i32
    %11 = arith.cmpi eq, %arg2, %c0_i32_8 : i32
    %12 = arith.extui %11 : i1 to i32
    %c0_i32_9 = arith.constant 0 : i32
    %13 = arith.cmpi ne, %12, %c0_i32_9 : i32
    scf.if %13 {
      %c0_10 = arith.constant 0 : index
      %c0_11 = arith.constant 0 : index
      %14 = vector.load %arg7[%c0_10, %c0_11] : memref<16x128xf32, #tpu.memory_space<vmem>>, vector<16x128xf32>
      %c0_12 = arith.constant 0 : index
      %c0_13 = arith.constant 0 : index
      %15 = vector.load %arg5[%c0_12, %c0_13] : memref<1x128xf32, #tpu.memory_space<vmem>>, vector<1x128xf32>
      %16 = vector.broadcast %15 : vector<1x128xf32> to vector<16x128xf32>
      %17 = arith.addf %14, %16 : vector<16x128xf32>
      %c0_14 = arith.constant 0 : index
      %c0_15 = arith.constant 0 : index
      %18 = vector.load %arg6[%c0_14, %c0_15] : memref<16x128xf32, #tpu.memory_space<vmem>>, vector<16x128xf32>
      tpu.vector_store %arg6[%c0_14, %c0_15], %17 {strides = array<i32>} : memref<16x128xf32, #tpu.memory_space<vmem>>, vector<16x128xf32>,
    } else {
    }
    return
  }
  func.func @transform_0(%arg0: i32, %arg1: i32, %arg2: i32) -> (i32, i32) {
    %c0_i32 = arith.constant 0 : i32
    return %arg0, %arg2 : i32, i32
  }
  func.func @transform_1(%arg0: i32, %arg1: i32, %arg2: i32) -> (i32, i32) {
    %c0_i32 = arith.constant 0 : i32
    return %arg2, %arg1 : i32, i32
  }
  func.func @transform_2(%arg0: i32, %arg1: i32, %arg2: i32) -> (i32, i32) {
    %c0_i32 = arith.constant 0 : i32
    %c0_i32_0 = arith.constant 0 : i32
    return %c0_i32, %arg1 : i32, i32
  }
  func.func @transform_3(%arg0: i32, %arg1: i32, %arg2: i32) -> (i32, i32) {
    %c0_i32 = arith.constant 0 : i32
    return %arg0, %arg1 : i32, i32
  }
}

</mosaic_0001>

<llo_original>
// kernel: tpu_custom_call.1
$region0: #{tpu_custom_call.1}
  #allocation0 [shape = 'u32[]', space=smem, size = 0x4, offset = 0x4, fixed_abs, tag = 'smem constant byte address 0x4 - core index']
  #allocation1 [shape = 'u32[144,128]{1,0:T(1,128)}', space=vmem, size = 0x12000, scoped, tag = 'internal scratch']
  #allocation2 [shape = 'f32[16,128]{1,0:T(8,128)}', space=vmem, size = 0x2000, scoped, tag = 'scratch operand']
  %s0 = inlined_call_operand.hbm [shape: f32[16,128], index: 0, kind: input, shape index: {}]
  %s1 = inlined_call_operand.hbm [shape: f32[128,128], index: 1, kind: input, shape index: {}]
  %s2 = inlined_call_operand.hbm [shape: f32[1,128], index: 2, kind: input, shape index: {}]
  %s3 = inlined_call_operand.hbm [shape: f32[16,128], index: 3, kind: output, shape index: {}]
  %s4 = sld [smem:[#allocation0]]
  $region42: #{tpu_custom_call.1} parent=0
    _
  %s6 = ssub.s32 1, %s4
  %s7 = scalar_select 0, %s6, %s4
  $region1: #{tpu_custom_call.1} parent=0
    #allocation3 [shape = 'u8[8192]{0}', space=vmem, size = 0x2000, scoped, tag = 'input window, operand 0, single buffered']
    #allocation4 [shape = 's32[1]{0}', space=sflag, size = 0x4, scoped, tag = 'scoped memory for tpu_custom_call.1']
    #allocation5 [shape = 's32[1]{0}', space=sflag, size = 0x4, scoped, tag = 'scoped memory for tpu_custom_call.1']
    #allocation6 [shape = 'u8[65536]{0}', space=vmem, size = 0x10000, scoped, tag = 'input window, operand 1, single buffered']
    #allocation7 [shape = 's32[1]{0}', space=sflag, size = 0x4, scoped, tag = 'scoped memory for tpu_custom_call.1']
    #allocation8 [shape = 'u8[512]{0}', space=vmem, size = 0x400, scoped, tag = 'input window, operand 2, single buffered']
    #allocation9 [shape = 'u8[8192]{0}', space=vmem, size = 0x2000, scoped, tag = 'output window, operand 0, single buffered']
    %8 = vsyncpa [#allocation4], 0
    %9 = vsyncpa [#allocation7], 0
    %10 = vsyncpa [#allocation5], 0
    // Predicated region
    $region2: #{tpu_custom_call.1} parent=1 // pred_check
      _
    $region3: #{tpu_custom_call.1} parent=1 // pred_check_branch
      %12 = sbr.rel (0) target = $region5
    $region4: #{tpu_custom_call.1} parent=1 // pred_region
      %s14 = ssub.s32 256, 256
      %15 = vsyncadd [#allocation4], %s14
      %s16 = sshll.u32 [#allocation3], 4
      %s17 = int_to_ptr.vmem [resolvable:$true] %s16
      %22 = dma.hbm_to_vmem [thread:$0]  %s0, 256, %s17, [#allocation4], 128, 128, 8
    $region5: #{tpu_custom_call.1} parent=1 // pred_fallthru
      _
    // Predicated region
    $region6: #{tpu_custom_call.1} parent=1 // pred_check
      _
    $region7: #{tpu_custom_call.1} parent=1 // pred_check_branch
      %24 = sbr.rel (0) target = $region9
    $region8: #{tpu_custom_call.1} parent=1 // pred_region
      %s26 = ssub.s32 2048, 2048
      %27 = vsyncadd [#allocation7], %s26
      %s28 = sshll.u32 [#allocation6], 4
      %s29 = int_to_ptr.vmem [resolvable:$true] %s28
      %34 = dma.hbm_to_vmem [thread:$0]  %s1, 2048, %s29, [#allocation7], 128, 128, 8
    $region9: #{tpu_custom_call.1} parent=1 // pred_fallthru
      _
    // Predicated region
    $region10: #{tpu_custom_call.1} parent=1 // pred_check
      _
    $region11: #{tpu_custom_call.1} parent=1 // pred_check_branch
      %36 = sbr.rel (0) target = $region13
    $region12: #{tpu_custom_call.1} parent=1 // pred_region
      %s38 = ssub.s32 16, 16
      %39 = vsyncadd [#allocation7], %s38
      %s41 = sshll.u32 [#allocation8], 4
      %s42 = int_to_ptr.vmem [resolvable:$true] %s41
      %44 = dma.hbm_to_vmem [thread:$0]  %s2, 16, %s42, [#allocation7]
    $region13: #{tpu_custom_call.1} parent=1 // pred_fallthru
      _
    // Predicated region
    $region14: #{tpu_custom_call.1} parent=1 // pred_check
      _
    $region15: #{tpu_custom_call.1} parent=1 // pred_check_branch
      %46 = sbr.rel (0) target = $region17
    $region16: #{tpu_custom_call.1} parent=1 // pred_region
      %47 = dma.done [#allocation4], 256
    $region17: #{tpu_custom_call.1} parent=1 // pred_fallthru
      _
    // Predicated region
    $region18: #{tpu_custom_call.1} parent=1 // pred_check
      _
    $region19: #{tpu_custom_call.1} parent=1 // pred_check_branch
      %49 = sbr.rel (0) target = $region21
    $region20: #{tpu_custom_call.1} parent=1 // pred_region
      %50 = dma.done [#allocation7], 2048
    $region21: #{tpu_custom_call.1} parent=1 // pred_fallthru
      _
    // Predicated region
    $region22: #{tpu_custom_call.1} parent=1 // pred_check
      _
    $region23: #{tpu_custom_call.1} parent=1 // pred_check_branch
      %52 = sbr.rel (0) target = $region25
    $region24: #{tpu_custom_call.1} parent=1 // pred_region
      %53 = dma.done [#allocation7], 16
    $region25: #{tpu_custom_call.1} parent=1 // pred_fallthru
      _
    %p55 = scmp.eq.s32.totalorder 0, 0
    // Predicated region
    $region26: #{tpu_custom_call.1} parent=1 // pred_check
      %p56 = pneg %p55
    $region27: #{tpu_custom_call.1} parent=1 // pred_check_branch
      %58 = sbr.rel (%p56) target = $region29
    $region28: #{tpu_custom_call.1} parent=1 // pred_region
      %59 = vst [vmem:[#allocation2] sm:$0xff] 0.0
      %60 = vst [vmem:[#allocation2 + $0x8] sm:$0xff] 0.0
    $region29: #{tpu_custom_call.1} parent=1 // pred_fallthru
      _
    %v61 = vld [vmem:[#allocation2] sm:$0xff]
    %v62 = vld [vmem:[#allocation2 + $0x8] sm:$0xff]
    %v63 = vld [vmem:[#allocation3] sm:$0xff]
    %v64 = vld [vmem:[#allocation3 + $0x8] sm:$0xff]
    %v65 = vld [vmem:[#allocation6] sm:$0xff]
    %v66 = vld [vmem:[#allocation6 + $0x8] sm:$0xff]
    %v67 = vld [vmem:[#allocation6 + $0x10] sm:$0xff]
    %v68 = vld [vmem:[#allocation6 + $0x18] sm:$0xff]
    %v69 = vld [vmem:[#allocation6 + $0x20] sm:$0xff]
    %v70 = vld [vmem:[#allocation6 + $0x28] sm:$0xff]
    %v71 = vld [vmem:[#allocation6 + $0x30] sm:$0xff]
    %v72 = vld [vmem:[#allocation6 + $0x38] sm:$0xff]
    %v73 = vld [vmem:[#allocation6 + $0x40] sm:$0xff]
    %v74 = vld [vmem:[#allocation6 + $0x48] sm:$0xff]
    %v75 = vld [vmem:[#allocation6 + $0x50] sm:$0xff]
    %v76 = vld [vmem:[#allocation6 + $0x58] sm:$0xff]
    %v77 = vld [vmem:[#allocation6 + $0x60] sm:$0xff]
    %v78 = vld [vmem:[#allocation6 + $0x68] sm:$0xff]
    %v79 = vld [vmem:[#allocation6 + $0x70] sm:$0xff]
    %v80 = vld [vmem:[#allocation6 + $0x78] sm:$0xff]
    %v81 = vpack.c.bf16 %v64, %v63
    %v82 = vpack.c.bf16 %v66, %v65
    %v83 = vpack.c.bf16 %v68, %v67
    %v84 = vpack.c.bf16 %v70, %v69
    %v85 = vpack.c.bf16 %v72, %v71
    %v86 = vpack.c.bf16 %v74, %v73
    %v87 = vpack.c.bf16 %v76, %v75
    %v88 = vpack.c.bf16 %v78, %v77
    %v89 = vpack.c.bf16 %v80, %v79
    %90 = vmatprep.subr.bf16.mxu0 0
    %91 = vmatpush1.bf16.msra.mxu0 %v82
    %92 = vmatprep.subr.bf16.mxu0 0
    %93 = vmatpush1.bf16.msra.mxu0 %v83
    %94 = vmatprep.subr.bf16.mxu0 0
    %95 = vmatpush1.bf16.msra.mxu0 %v84
    %96 = vmatprep.subr.bf16.mxu0 0
    %97 = vmatpush1.bf16.msra.mxu0 %v85
    %98 = vmatprep.subr.bf16.mxu0 0
    %99 = vmatpush1.bf16.msra.mxu0 %v86
    %100 = vmatprep.subr.bf16.mxu0 0
    %101 = vmatpush1.bf16.msra.mxu0 %v87
    %102 = vmatprep.subr.bf16.mxu0 0
    %103 = vmatpush1.bf16.msra.mxu0 %v88
    %104 = vmatprep.subr.bf16.mxu0 0
    %105 = vmatpush1.bf16.msra.mxu0 %v89
    %106 = vmatprep.subr.bf16.mxu0 0
    %107 = vmatpush1.bf16.msra.mxu0 0
    %108 = vmatprep.subr.bf16.mxu0 0
    %109 = vmatpush1.bf16.msra.mxu0 0
    %110 = vmatprep.subr.bf16.mxu0 0
    %111 = vmatpush1.bf16.msra.mxu0 0
    %112 = vmatprep.subr.bf16.mxu0 0
    %113 = vmatpush1.bf16.msra.mxu0 0
    %114 = vmatprep.subr.bf16.mxu0 0
    %115 = vmatpush1.bf16.msra.mxu0 0
    %116 = vmatprep.subr.bf16.mxu0 0
    %117 = vmatpush1.bf16.msra.mxu0 0
    %118 = vmatprep.subr.bf16.mxu0 0
    %119 = vmatpush1.bf16.msra.mxu0 0
    %120 = vmatprep.subr.bf16.mxu0 0
    %121 = vmatpush1.bf16.msra.mxu0 0
    %122 = vmatprep.mubr.bf16.mxu0 0
    %123 = vmatmul.mubr.bf16.gmra.mrb[0].mxu0 %v81
    %v124 = vpop.f32.mrb[0].mxu0
    %v125 = vadd.f32 0.0, %v124
    %v126 = vpop.f32.mrb[0].mxu0
    %v127 = vpop.f32.mrb[0].mxu0
    %v128 = vadd.f32 0.0, %v127
    %v129 = vpop.f32.mrb[0].mxu0
    %130 = vdwg.mxu0
    %v131 = vadd.f32 %v61, %v125
    %v132 = vadd.f32 %v62, %v128
    %133 = vst [vmem:[#allocation2] sm:$0xff] %v131
    %134 = vst [vmem:[#allocation2 + $0x8] sm:$0xff] %v132
    // Predicated region
    $region30: #{tpu_custom_call.1} parent=1 // pred_check
      %p135 = pneg %p55
    $region31: #{tpu_custom_call.1} parent=1 // pred_check_branch
      %137 = sbr.rel (%p135) target = $region33
    $region32: #{tpu_custom_call.1} parent=1 // pred_region
      %v138 = vld [vmem:[#allocation2] sm:$0xff]
      %v139 = vld [vmem:[#allocation2 + $0x8] sm:$0xff]
      %v140 = vld [vmem:[#allocation8] sm:$0x1]
      %v142 = vlaneseq
      %v143 = vshrl.u32 %v142, 7
      %v144 = vsub.s32 0, %v143
      %v145 = vrot.slane %v140, %v144
      %v147 = vadd.f32 %v138, %v145
      %v148 = vadd.f32 %v139, %v145
      %149 = vst [vmem:[#allocation9] sm:$0xff] %v147
      %150 = vst [vmem:[#allocation9 + $0x8] sm:$0xff] %v148
    $region33: #{tpu_custom_call.1} parent=1 // pred_fallthru
      _
    // Predicated region
    $region34: #{tpu_custom_call.1} parent=1 // pred_check
      _
    $region35: #{tpu_custom_call.1} parent=1 // pred_check_branch
      %152 = sbr.rel (0) target = $region37
    $region36: #{tpu_custom_call.1} parent=1 // pred_region
      %s154 = ssub.s32 256, 256
      %155 = vsyncadd [#allocation5], %s154
      %s156 = sshll.u32 [#allocation9], 4
      %s157 = int_to_ptr.vmem [resolvable:$true] %s156
      %162 = dma.vmem_to_hbm [thread:$0]  %s157, 256, %s3, [#allocation5], 128, 128, 8
    $region37: #{tpu_custom_call.1} parent=1 // pred_fallthru
      _
    // Predicated region
    $region38: #{tpu_custom_call.1} parent=1 // pred_check
      _
    $region39: #{tpu_custom_call.1} parent=1 // pred_check_branch
      %164 = sbr.rel (0) target = $region41
    $region40: #{tpu_custom_call.1} parent=1 // pred_region
      %165 = dma.done [#allocation5], 256
    $region41: #{tpu_custom_call.1} parent=1 // pred_fallthru
      _
    %166 = vsyncpa [#allocation4], 1
    %167 = vsyncpa [#allocation7], 1
    %168 = vsyncpa [#allocation5], 1

</llo_original>
